<compile_context>
chip_gen: v7x
topology: tpu7x:2x2x1
jax: 0.10.0
libtpu: 0.0.40
codegen_flags: <defaults>
</compile_context>

<pallas_src>
import functools
import math

import jax
import jax.numpy as jnp
from jax.experimental import pallas as pl
from jax.experimental.pallas import tpu as pltpu


def _pick_tile_rows(H, W, cin, oup):
    """Rows per grid step (row-tile height TH).

    Preferences: TH divides H (keeps halo indexing exact); TH*W is a multiple of
    128 (lane-dense, unmasked stores); per-step buffers stay ~< 4 MiB including
    double buffering (sized for v7x's 64 MiB VMEM / 32 MiB scoped default); and
    at least 2 row-tiles so the pipeline overlaps DMA with compute and the grid
    can shard across both v7x TensorCores even at batch 1.
    Falls back to the whole image (single tile) if nothing qualifies.
    """
    # bytes/step ~= 2 buffers * (3 x-streams * cin + oup) * TM * 4B
    cap_elems = max(128, (4 << 20) // (8 * (3 * cin + oup)))
    best = None
    for th in range(1, H + 1):
        if H % th:
            continue
        tm = th * W
        if tm % 128 or tm > cap_elems or (H // th) < 2:
            continue
        best = th  # ascending -> keep the largest qualifying tile
    return best if best is not None else H


def _ghost_kernel(xc_ref, xp_ref, xn_ref, w1_ref, s1_ref, b1_ref,
                  wdw_ref, s2_ref, b2_ref, o_ref, ext_ref, *, W, use_fma):
    """Fused GhostModule forward for one (batch, row-tile) grid step.

    xc/xp/xn: (Cin, TM) current / previous / next flattened row-chunk of x.
    w1: (Cmid, Cin); s1, b1, s2, b2: (Cmid, 1); wdw: (Cmid, 9).
    o_ref: (oup, TM). ext_ref: (Cmid, TM + 2W + 2) VMEM scratch = x1 for this tile
    with a one-image-row halo on each side plus one (masked) corner lane per side.
    """
    i = pl.program_id(1)
    n_tiles = pl.num_programs(1)
    Cin, TM = xc_ref.shape
    Cmid = s1_ref.shape[0]
    oup = o_ref.shape[0]

    def conv1x1_bn_relu(xp):  # (Cin, L) -> (Cmid, L)
        if use_fma:  # tiny channel counts: stay on the VPU, skip the MXU
            acc = w1_ref[:, 0:1] * xp[0:1, :]
            for ci in range(1, Cin):
                acc = acc + w1_ref[:, ci:ci + 1] * xp[ci:ci + 1, :]
        else:
            acc = jnp.dot(w1_ref[...], xp, preferred_element_type=jnp.float32)
        return jnp.maximum(acc * s1_ref[...] + b1_ref[...], 0.0)

    # primary_conv on the tile and on the single halo row above / below it.
    x1_mid = conv1x1_bn_relu(xc_ref[...])            # (Cmid, TM)
    x1_top = conv1x1_bn_relu(xp_ref[:, TM - W:])     # (Cmid, W)  last row of prev chunk
    x1_bot = conv1x1_bn_relu(xn_ref[:, :W])          # (Cmid, W)  first row of next chunk
    # zero padding of the depthwise conv at the image top / bottom
    x1_top = x1_top * (i > 0).astype(jnp.float32)
    x1_bot = x1_bot * (i < n_tiles - 1).astype(jnp.float32)

    # stage x1 + halo into scratch: [corner | top row | tile | bottom row | corner]
    zcol = jnp.zeros((Cmid, 1), jnp.float32)
    ext_ref[:, 0:1] = zcol
    ext_ref[:, 1:1 + W] = x1_top
    ext_ref[:, 1 + W:1 + W + TM] = x1_mid
    ext_ref[:, 1 + W + TM:1 + 2 * W + TM] = x1_bot
    ext_ref[:, 1 + 2 * W + TM:2 + 2 * W + TM] = zcol

    # lane masks for left/right image borders (row wraparound in the flat layout).
    col = jax.lax.broadcasted_iota(jnp.int32, (1, TM), 1) % W
    not_first_col = (col != 0).astype(jnp.float32)
    not_last_col = (col != W - 1).astype(jnp.float32)

    # cheap_operation: 3x3 depthwise conv as 9 statically shifted taps on the scratch.
    acc = jnp.zeros((Cmid, TM), jnp.float32)
    for dy in range(3):
        for dx in range(3):
            tap = ext_ref[:, dy * W + dx:dy * W + dx + TM]   # (Cmid, TM)
            if dx == 0:
                tap = tap * not_first_col
            elif dx == 2:
                tap = tap * not_last_col
            k = 3 * dy + dx
            acc = acc + wdw_ref[:, k:k + 1] * tap
    x2 = jnp.maximum(acc * s2_ref[...] + b2_ref[...], 0.0)

    # torch.cat([x1, x2], dim=1)[:, :oup] written directly -- no extra HBM pass.
    if oup > Cmid:
        o_ref[...] = jnp.concatenate([x1_mid, x2[:oup - Cmid, :]], axis=0)
    else:
        o_ref[...] = x1_mid[:oup, :]


@functools.partial(jax.jit, static_argnums=(2,))
def ghost_module(x, params, oup):
    """GhostModule forward (stride=1, kernel_size=1, dw_size=3, ratio=2, relu=True)."""
    # TODO(synk): stride>1 (AvgPool2d pre-pool) not implemented; module default stride=1.
    N, Cin, H, W = x.shape
    Cmid = params["scale1"].shape[0]
    assert params["w_dw"].shape == (Cmid, 3, 3), "kernel implements dw_size=3"
    assert Cmid <= oup <= 2 * Cmid

    TH = _pick_tile_rows(H, W, Cin, oup)
    nT = H // TH
    TM = TH * W
    M = H * W

    x_flat = x.reshape(N, Cin, M)                 # free reshape (row-major)
    w1 = params["w1"]                             # (Cmid, Cin)
    s1 = params["scale1"].reshape(Cmid, 1)
    b1 = params["bias1"].reshape(Cmid, 1)
    wdw = params["w_dw"].reshape(Cmid, 9)
    s2 = params["scale2"].reshape(Cmid, 1)
    b2 = params["bias2"].reshape(Cmid, 1)

    x_cur = pl.BlockSpec((None, Cin, TM), lambda n, i: (n, 0, i))
    x_prev = pl.BlockSpec((None, Cin, TM),
                          lambda n, i: (n, 0, jnp.maximum(i - 1, 0)))
    x_next = pl.BlockSpec((None, Cin, TM),
                          lambda n, i: (n, 0, jnp.minimum(i + 1, nT - 1)))
    full = lambda shape: pl.BlockSpec(shape, lambda n, i: (0, 0))

    kernel = functools.partial(_ghost_kernel, W=W, use_fma=(Cin <= 16))
    out = pl.pallas_call(
        kernel,
        grid=(N, nT),
        in_specs=[
            x_cur, x_prev, x_next,
            full((Cmid, Cin)), full((Cmid, 1)), full((Cmid, 1)),
            full((Cmid, 9)), full((Cmid, 1)), full((Cmid, 1)),
        ],
        out_specs=pl.BlockSpec((None, oup, TM), lambda n, i: (n, 0, i)),
        out_shape=jax.ShapeDtypeStruct((N, oup, M), jnp.float32),
        scratch_shapes=[pltpu.VMEM((Cmid, TM + 2 * W + 2), jnp.float32)],
        compiler_params=pltpu.CompilerParams(
            dimension_semantics=("parallel", "parallel")),
    )(x_flat, x_flat, x_flat, w1, s1, b1, wdw, s2, b2)
    return out.reshape(N, oup, H, W)


# ---------------------------------------------------------------------------
# Parameters (BatchNorm folded to scale/bias, inference form) + pure-JAX reference
# ---------------------------------------------------------------------------
def _fold_bn(gamma, beta, mean, var, eps=1e-5):
    scale = gamma / jnp.sqrt(var + eps)
    return scale, beta - mean * scale


def make_params(key, inp, oup, ratio=2, dw_size=3):
    init_channels = math.ceil(oup / ratio)
    new_channels = init_channels * (ratio - 1)
    assert new_channels == init_channels, "depthwise channel mapping assumes ratio=2"
    ks = jax.random.split(key, 10)
    # primary 1x1 conv: torch weight (init_channels, inp, 1, 1) -> (Cmid, Cin)
    w1 = 0.1 * jax.random.normal(ks[0], (init_channels, inp), jnp.float32)
    g1 = jax.random.uniform(ks[1], (init_channels,), jnp.float32, 0.5, 1.5)
    b1 = 0.1 * jax.random.normal(ks[2], (init_channels,), jnp.float32)
    m1 = 0.1 * jax.random.normal(ks[3], (init_channels,), jnp.float32)
    v1 = jax.random.uniform(ks[4], (init_channels,), jnp.float32, 0.5, 1.5)
    scale1, bias1 = _fold_bn(g1, b1, m1, v1)
    # cheap depthwise conv: torch weight (new_channels, 1, 3, 3) -> (Cmid, 3, 3)
    w_dw = 0.1 * jax.random.normal(ks[5], (new_channels, dw_size, dw_size), jnp.float32)
    g2 = jax.random.uniform(ks[6], (new_channels,), jnp.float32, 0.5, 1.5)
    b2 = 0.1 * jax.random.normal(ks[7], (new_channels,), jnp.float32)
    m2 = 0.1 * jax.random.normal(ks[8], (new_channels,), jnp.float32)
    v2 = jax.random.uniform(ks[9], (new_channels,), jnp.float32, 0.5, 1.5)
    scale2, bias2 = _fold_bn(g2, b2, m2, v2)
    return {"w1": w1, "scale1": scale1, "bias1": bias1,
            "w_dw": w_dw, "scale2": scale2, "bias2": bias2}


def ghost_module_reference(x, params, oup):
    """Pure-JAX reference (mirrors the PyTorch module, NCHW)."""
    w1, s1, b1 = params["w1"], params["scale1"], params["bias1"]
    wdw, s2, b2 = params["w_dw"], params["scale2"], params["bias2"]
    x1 = jnp.einsum("oc,nchw->nohw", w1, x)
    x1 = jnp.maximum(x1 * s1[None, :, None, None] + b1[None, :, None, None], 0.0)
    N, C, H, W = x1.shape
    x1p = jnp.pad(x1, ((0, 0), (0, 0), (1, 1), (1, 1)))
    x2 = jnp.zeros_like(x1)
    for dy in range(3):
        for dx in range(3):
            x2 = x2 + wdw[None, :, dy, dx, None, None] * x1p[:, :, dy:dy + H, dx:dx + W]
    x2 = jnp.maximum(x2 * s2[None, :, None, None] + b2[None, :, None, None], 0.0)
    out = jnp.concatenate([x1, x2], axis=1)
    return out[:, :oup]


if __name__ == "__main__":
    inp, oup = 4, 8
    N, H, W = 2, 16, 16

    key = jax.random.PRNGKey(0)
    k_x, k_p = jax.random.split(key)
    x = jax.random.normal(k_x, (N, inp, H, W), jnp.float32)  # NCHW, same as torch
    params = make_params(k_p, inp, oup)

    out = ghost_module(x, params, oup)
    out = jax.block_until_ready(out)
    assert out.shape == (N, oup, H, W), out.shape
    assert out.dtype == jnp.float32

    ref = ghost_module_reference(x, params, oup)
    err = float(jnp.max(jnp.abs(out - ref)))
    assert jnp.allclose(out, ref, atol=1e-4, rtol=1e-4), f"max abs err {err}"
    print("KERNEL_OK")
</pallas_src>

<mosaic_0001>
module attributes {stable_mosaic.version = 11 : i64} {
  func.func @_ghost_kernel(%arg0: i32, %arg1: i32, %arg2: memref<1x4x128xf32, #tpu.memory_space<vmem>>, %arg3: memref<1x4x128xf32, #tpu.memory_space<vmem>>, %arg4: memref<1x4x128xf32, #tpu.memory_space<vmem>>, %arg5: memref<4x4xf32, #tpu.memory_space<vmem>>, %arg6: memref<4x1xf32, #tpu.memory_space<vmem>>, %arg7: memref<4x1xf32, #tpu.memory_space<vmem>>, %arg8: memref<4x9xf32, #tpu.memory_space<vmem>>, %arg9: memref<4x1xf32, #tpu.memory_space<vmem>>, %arg10: memref<4x1xf32, #tpu.memory_space<vmem>>, %arg11: memref<1x8x128xf32, #tpu.memory_space<vmem>>, %arg12: memref<4x162xf32, #tpu.memory_space<vmem>>) attributes {dimension_semantics = [#tpu.dimension_semantics<parallel>, #tpu.dimension_semantics<parallel>], iteration_bounds = array<i64: 2, 2>, scalar_prefetch = 0 : i64, scratch_operands = 1 : i64, tpu.core_type = #tpu.core_type<tc>, window_params = [{transform_indices = @transform_0, window_bounds = array<i64: 1, 4, 128>}, {transform_indices = @transform_1, window_bounds = array<i64: 1, 4, 128>}, {transform_indices = @transform_2, window_bounds = array<i64: 1, 4, 128>}, {pipeline_mode = #tpu.pipeline_mode<synchronous>, transform_indices = @transform_3, window_bounds = array<i64: 4, 4>}, {pipeline_mode = #tpu.pipeline_mode<synchronous>, transform_indices = @transform_4, window_bounds = array<i64: 4, 1>}, {pipeline_mode = #tpu.pipeline_mode<synchronous>, transform_indices = @transform_5, window_bounds = array<i64: 4, 1>}, {pipeline_mode = #tpu.pipeline_mode<synchronous>, transform_indices = @transform_6, window_bounds = array<i64: 4, 9>}, {pipeline_mode = #tpu.pipeline_mode<synchronous>, transform_indices = @transform_7, window_bounds = array<i64: 4, 1>}, {pipeline_mode = #tpu.pipeline_mode<synchronous>, transform_indices = @transform_8, window_bounds = array<i64: 4, 1>}, {transform_indices = @transform_9, window_bounds = array<i64: 1, 8, 128>}]} {
    %c0 = arith.constant 0 : index
    %c0_0 = arith.constant 0 : index
    %c0_1 = arith.constant 0 : index
    %0 = vector.load %arg2[%c0, %c0_0, %c0_1] : memref<1x4x128xf32, #tpu.memory_space<vmem>>, vector<1x4x128xf32>
    %1 = vector.shape_cast %0 : vector<1x4x128xf32> to vector<4x128xf32>
    %c0_2 = arith.constant 0 : index
    %c0_3 = arith.constant 0 : index
    %2 = vector.load %arg5[%c0_2, %c0_3] : memref<4x4xf32, #tpu.memory_space<vmem>>, vector<4x1xf32>
    %3 = vector.extract_strided_slice %1 {offsets = [0, 0], sizes = [1, 128], strides = [1, 1]} : vector<4x128xf32> to vector<1x128xf32>
    %4 = vector.broadcast %2 : vector<4x1xf32> to vector<4x128xf32>
    %5 = vector.broadcast %3 : vector<1x128xf32> to vector<4x128xf32>
    %6 = arith.mulf %4, %5 : vector<4x128xf32>
    %c0_4 = arith.constant 0 : index
    %c1 = arith.constant 1 : index
    %7 = vector.load %arg5[%c0_4, %c1] : memref<4x4xf32, #tpu.memory_space<vmem>>, vector<4x1xf32>
    %8 = vector.extract_strided_slice %1 {offsets = [1, 0], sizes = [1, 128], strides = [1, 1]} : vector<4x128xf32> to vector<1x128xf32>
    %9 = vector.broadcast %7 : vector<4x1xf32> to vector<4x128xf32>
    %10 = vector.broadcast %8 : vector<1x128xf32> to vector<4x128xf32>
    %11 = arith.mulf %9, %10 : vector<4x128xf32>
    %12 = arith.addf %6, %11 : vector<4x128xf32>
    %c0_5 = arith.constant 0 : index
    %c2 = arith.constant 2 : index
    %13 = vector.load %arg5[%c0_5, %c2] : memref<4x4xf32, #tpu.memory_space<vmem>>, vector<4x1xf32>
    %14 = vector.extract_strided_slice %1 {offsets = [2, 0], sizes = [1, 128], strides = [1, 1]} : vector<4x128xf32> to vector<1x128xf32>
    %15 = vector.broadcast %13 : vector<4x1xf32> to vector<4x128xf32>
    %16 = vector.broadcast %14 : vector<1x128xf32> to vector<4x128xf32>
    %17 = arith.mulf %15, %16 : vector<4x128xf32>
    %18 = arith.addf %12, %17 : vector<4x128xf32>
    %c0_6 = arith.constant 0 : index
    %c3 = arith.constant 3 : index
    %19 = vector.load %arg5[%c0_6, %c3] : memref<4x4xf32, #tpu.memory_space<vmem>>, vector<4x1xf32>
    %20 = vector.extract_strided_slice %1 {offsets = [3, 0], sizes = [1, 128], strides = [1, 1]} : vector<4x128xf32> to vector<1x128xf32>
    %21 = vector.broadcast %19 : vector<4x1xf32> to vector<4x128xf32>
    %22 = vector.broadcast %20 : vector<1x128xf32> to vector<4x128xf32>
    %23 = arith.mulf %21, %22 : vector<4x128xf32>
    %24 = arith.addf %18, %23 : vector<4x128xf32>
    %c0_7 = arith.constant 0 : index
    %c0_8 = arith.constant 0 : index
    %25 = vector.load %arg6[%c0_7, %c0_8] : memref<4x1xf32, #tpu.memory_space<vmem>>, vector<4x1xf32>
    %26 = vector.broadcast %25 : vector<4x1xf32> to vector<4x128xf32>
    %27 = arith.mulf %24, %26 : vector<4x128xf32>
    %c0_9 = arith.constant 0 : index
    %c0_10 = arith.constant 0 : index
    %28 = vector.load %arg7[%c0_9, %c0_10] : memref<4x1xf32, #tpu.memory_space<vmem>>, vector<4x1xf32>
    %29 = vector.broadcast %28 : vector<4x1xf32> to vector<4x128xf32>
    %30 = arith.addf %27, %29 : vector<4x128xf32>
    %cst = arith.constant 0.000000e+00 : f32
    %31 = vector.broadcast %cst : f32 to vector<4x128xf32>
    %32 = arith.maximumf %30, %31 : vector<4x128xf32>
    %c0_11 = arith.constant 0 : index
    %c0_12 = arith.constant 0 : index
    %c112 = arith.constant 112 : index
    %33 = vector.load %arg3[%c0_11, %c0_12, %c112] : memref<1x4x128xf32, #tpu.memory_space<vmem>>, vector<1x4x16xf32>
    %34 = vector.shape_cast %33 : vector<1x4x16xf32> to vector<4x16xf32>
    %c0_13 = arith.constant 0 : index
    %c0_14 = arith.constant 0 : index
    %35 = vector.load %arg5[%c0_13, %c0_14] : memref<4x4xf32, #tpu.memory_space<vmem>>, vector<4x1xf32>
    %36 = vector.extract_strided_slice %34 {offsets = [0, 0], sizes = [1, 16], strides = [1, 1]} : vector<4x16xf32> to vector<1x16xf32>
    %37 = vector.broadcast %35 : vector<4x1xf32> to vector<4x16xf32>
    %38 = vector.broadcast %36 : vector<1x16xf32> to vector<4x16xf32>
    %39 = arith.mulf %37, %38 : vector<4x16xf32>
    %c0_15 = arith.constant 0 : index
    %c1_16 = arith.constant 1 : index
    %40 = vector.load %arg5[%c0_15, %c1_16] : memref<4x4xf32, #tpu.memory_space<vmem>>, vector<4x1xf32>
    %41 = vector.extract_strided_slice %34 {offsets = [1, 0], sizes = [1, 16], strides = [1, 1]} : vector<4x16xf32> to vector<1x16xf32>
    %42 = vector.broadcast %40 : vector<4x1xf32> to vector<4x16xf32>
    %43 = vector.broadcast %41 : vector<1x16xf32> to vector<4x16xf32>
    %44 = arith.mulf %42, %43 : vector<4x16xf32>
    %45 = arith.addf %39, %44 : vector<4x16xf32>
    %c0_17 = arith.constant 0 : index
    %c2_18 = arith.constant 2 : index
    %46 = vector.load %arg5[%c0_17, %c2_18] : memref<4x4xf32, #tpu.memory_space<vmem>>, vector<4x1xf32>
    %47 = vector.extract_strided_slice %34 {offsets = [2, 0], sizes = [1, 16], strides = [1, 1]} : vector<4x16xf32> to vector<1x16xf32>
    %48 = vector.broadcast %46 : vector<4x1xf32> to vector<4x16xf32>
    %49 = vector.broadcast %47 : vector<1x16xf32> to vector<4x16xf32>
    %50 = arith.mulf %48, %49 : vector<4x16xf32>
    %51 = arith.addf %45, %50 : vector<4x16xf32>
    %c0_19 = arith.constant 0 : index
    %c3_20 = arith.constant 3 : index
    %52 = vector.load %arg5[%c0_19, %c3_20] : memref<4x4xf32, #tpu.memory_space<vmem>>, vector<4x1xf32>
    %53 = vector.extract_strided_slice %34 {offsets = [3, 0], sizes = [1, 16], strides = [1, 1]} : vector<4x16xf32> to vector<1x16xf32>
    %54 = vector.broadcast %52 : vector<4x1xf32> to vector<4x16xf32>
    %55 = vector.broadcast %53 : vector<1x16xf32> to vector<4x16xf32>
    %56 = arith.mulf %54, %55 : vector<4x16xf32>
    %57 = arith.addf %51, %56 : vector<4x16xf32>
    %c0_21 = arith.constant 0 : index
    %c0_22 = arith.constant 0 : index
    %58 = vector.load %arg6[%c0_21, %c0_22] : memref<4x1xf32, #tpu.memory_space<vmem>>, vector<4x1xf32>
    %59 = vector.broadcast %58 : vector<4x1xf32> to vector<4x16xf32>
    %60 = arith.mulf %57, %59 : vector<4x16xf32>
    %c0_23 = arith.constant 0 : index
    %c0_24 = arith.constant 0 : index
    %61 = vector.load %arg7[%c0_23, %c0_24] : memref<4x1xf32, #tpu.memory_space<vmem>>, vector<4x1xf32>
    %62 = vector.broadcast %61 : vector<4x1xf32> to vector<4x16xf32>
    %63 = arith.addf %60, %62 : vector<4x16xf32>
    %cst_25 = arith.constant 0.000000e+00 : f32
    %64 = vector.broadcast %cst_25 : f32 to vector<4x16xf32>
    %65 = arith.maximumf %63, %64 : vector<4x16xf32>
    %c0_26 = arith.constant 0 : index
    %c0_27 = arith.constant 0 : index
    %c0_28 = arith.constant 0 : index
    %66 = vector.load %arg4[%c0_26, %c0_27, %c0_28] : memref<1x4x128xf32, #tpu.memory_space<vmem>>, vector<1x4x16xf32>
    %67 = vector.shape_cast %66 : vector<1x4x16xf32> to vector<4x16xf32>
    %c0_29 = arith.constant 0 : index
    %c0_30 = arith.constant 0 : index
    %68 = vector.load %arg5[%c0_29, %c0_30] : memref<4x4xf32, #tpu.memory_space<vmem>>, vector<4x1xf32>
    %69 = vector.extract_strided_slice %67 {offsets = [0, 0], sizes = [1, 16], strides = [1, 1]} : vector<4x16xf32> to vector<1x16xf32>
    %70 = vector.broadcast %68 : vector<4x1xf32> to vector<4x16xf32>
    %71 = vector.broadcast %69 : vector<1x16xf32> to vector<4x16xf32>
    %72 = arith.mulf %70, %71 : vector<4x16xf32>
    %c0_31 = arith.constant 0 : index
    %c1_32 = arith.constant 1 : index
    %73 = vector.load %arg5[%c0_31, %c1_32] : memref<4x4xf32, #tpu.memory_space<vmem>>, vector<4x1xf32>
    %74 = vector.extract_strided_slice %67 {offsets = [1, 0], sizes = [1, 16], strides = [1, 1]} : vector<4x16xf32> to vector<1x16xf32>
    %75 = vector.broadcast %73 : vector<4x1xf32> to vector<4x16xf32>
    %76 = vector.broadcast %74 : vector<1x16xf32> to vector<4x16xf32>
    %77 = arith.mulf %75, %76 : vector<4x16xf32>
    %78 = arith.addf %72, %77 : vector<4x16xf32>
    %c0_33 = arith.constant 0 : index
    %c2_34 = arith.constant 2 : index
    %79 = vector.load %arg5[%c0_33, %c2_34] : memref<4x4xf32, #tpu.memory_space<vmem>>, vector<4x1xf32>
    %80 = vector.extract_strided_slice %67 {offsets = [2, 0], sizes = [1, 16], strides = [1, 1]} : vector<4x16xf32> to vector<1x16xf32>
    %81 = vector.broadcast %79 : vector<4x1xf32> to vector<4x16xf32>
    %82 = vector.broadcast %80 : vector<1x16xf32> to vector<4x16xf32>
    %83 = arith.mulf %81, %82 : vector<4x16xf32>
    %84 = arith.addf %78, %83 : vector<4x16xf32>
    %c0_35 = arith.constant 0 : index
    %c3_36 = arith.constant 3 : index
    %85 = vector.load %arg5[%c0_35, %c3_36] : memref<4x4xf32, #tpu.memory_space<vmem>>, vector<4x1xf32>
    %86 = vector.extract_strided_slice %67 {offsets = [3, 0], sizes = [1, 16], strides = [1, 1]} : vector<4x16xf32> to vector<1x16xf32>
    %87 = vector.broadcast %85 : vector<4x1xf32> to vector<4x16xf32>
    %88 = vector.broadcast %86 : vector<1x16xf32> to vector<4x16xf32>
    %89 = arith.mulf %87, %88 : vector<4x16xf32>
    %90 = arith.addf %84, %89 : vector<4x16xf32>
    %c0_37 = arith.constant 0 : index
    %c0_38 = arith.constant 0 : index
    %91 = vector.load %arg6[%c0_37, %c0_38] : memref<4x1xf32, #tpu.memory_space<vmem>>, vector<4x1xf32>
    %92 = vector.broadcast %91 : vector<4x1xf32> to vector<4x16xf32>
    %93 = arith.mulf %90, %92 : vector<4x16xf32>
    %c0_39 = arith.constant 0 : index
    %c0_40 = arith.constant 0 : index
    %94 = vector.load %arg7[%c0_39, %c0_40] : memref<4x1xf32, #tpu.memory_space<vmem>>, vector<4x1xf32>
    %95 = vector.broadcast %94 : vector<4x1xf32> to vector<4x16xf32>
    %96 = arith.addf %93, %95 : vector<4x16xf32>
    %cst_41 = arith.constant 0.000000e+00 : f32
    %97 = vector.broadcast %cst_41 : f32 to vector<4x16xf32>
    %98 = arith.maximumf %96, %97 : vector<4x16xf32>
    %c0_i32 = arith.constant 0 : i32
    %99 = arith.cmpi sgt, %arg1, %c0_i32 : i32
    %100 = arith.extui %99 : i1 to i32
    %101 = arith.sitofp %100 : i32 to f32
    %102 = vector.broadcast %101 : f32 to vector<4x16xf32>
    %103 = arith.mulf %65, %102 : vector<4x16xf32>
    %c1_i32 = arith.constant 1 : i32
    %104 = arith.cmpi slt, %arg1, %c1_i32 : i32
    %105 = arith.extui %104 : i1 to i32
    %106 = arith.sitofp %105 : i32 to f32
    %107 = vector.broadcast %106 : f32 to vector<4x16xf32>
    %108 = arith.mulf %98, %107 : vector<4x16xf32>
    %cst_42 = arith.constant 0.000000e+00 : f32
    %109 = vector.broadcast %cst_42 : f32 to vector<4x1xf32>
    %c0_43 = arith.constant 0 : index
    %c0_44 = arith.constant 0 : index
    %110 = vector.load %arg12[%c0_43, %c0_44] : memref<4x162xf32, #tpu.memory_space<vmem>>, vector<4x1xf32>
    tpu.vector_store %arg12[%c0_43, %c0_44], %109 {strides = array<i32>} : memref<4x162xf32, #tpu.memory_space<vmem>>, vector<4x1xf32>,
    %c0_45 = arith.constant 0 : index
    %c1_46 = arith.constant 1 : index
    %111 = vector.load %arg12[%c0_45, %c1_46] : memref<4x162xf32, #tpu.memory_space<vmem>>, vector<4x16xf32>
    tpu.vector_store %arg12[%c0_45, %c1_46], %103 {strides = array<i32>} : memref<4x162xf32, #tpu.memory_space<vmem>>, vector<4x16xf32>,
    %c0_47 = arith.constant 0 : index
    %c17 = arith.constant 17 : index
    %112 = vector.load %arg12[%c0_47, %c17] : memref<4x162xf32, #tpu.memory_space<vmem>>, vector<4x128xf32>
    tpu.vector_store %arg12[%c0_47, %c17], %32 {strides = array<i32>} : memref<4x162xf32, #tpu.memory_space<vmem>>, vector<4x128xf32>,
    %c0_48 = arith.constant 0 : index
    %c145 = arith.constant 145 : index
    %113 = vector.load %arg12[%c0_48, %c145] : memref<4x162xf32, #tpu.memory_space<vmem>>, vector<4x16xf32>
    tpu.vector_store %arg12[%c0_48, %c145], %108 {strides = array<i32>} : memref<4x162xf32, #tpu.memory_space<vmem>>, vector<4x16xf32>,
    %c0_49 = arith.constant 0 : index
    %c161 = arith.constant 161 : index
    %114 = vector.load %arg12[%c0_49, %c161] : memref<4x162xf32, #tpu.memory_space<vmem>>, vector<4x1xf32>
    tpu.vector_store %arg12[%c0_49, %c161], %109 {strides = array<i32>} : memref<4x162xf32, #tpu.memory_space<vmem>>, vector<4x1xf32>,
    %115 = tpu.iota {dimensions = array<i32: 1>} : vector<1x128xi32>
    %c16_i32 = arith.constant 16 : i32
    %c0_i32_50 = arith.constant 0 : i32
    %116 = arith.cmpi eq, %c16_i32, %c0_i32_50 : i32
    %c1_i32_51 = arith.constant 1 : i32
    %117 = arith.select %116, %c1_i32_51, %c16_i32 : i32
    %118 = vector.broadcast %117 : i32 to vector<1x128xi32>
    %119 = arith.remsi %115, %118 : vector<1x128xi32>
    %c0_i32_52 = arith.constant 0 : i32
    %120 = vector.broadcast %c0_i32_52 : i32 to vector<1x128xi32>
    %121 = arith.cmpi ne, %119, %120 : vector<1x128xi32>
    %c0_i32_53 = arith.constant 0 : i32
    %122 = vector.broadcast %c0_i32_53 : i32 to vector<1x128xi32>
    %123 = arith.cmpi slt, %119, %122 : vector<1x128xi32>
    %c0_i32_54 = arith.constant 0 : i32
    %124 = arith.cmpi slt, %117, %c0_i32_54 : i32
    %125 = vector.broadcast %124 : i1 to vector<1x128xi1>
    %126 = vector.broadcast %125 : vector<1x128xi1> to vector<1x128xi1>
    %127 = arith.xori %123, %126 : vector<1x128xi1>
    %128 = arith.andi %127, %121 : vector<1x128xi1>
    %129 = vector.broadcast %117 : i32 to vector<1x128xi32>
    %130 = arith.addi %119, %129 : vector<1x128xi32>
    %131 = arith.select %128, %130, %119 : vector<1x128xi1>, vector<1x128xi32>
    %c0_i32_55 = arith.constant 0 : i32
    %132 = vector.broadcast %c0_i32_55 : i32 to vector<1x128xi32>
    %133 = arith.cmpi ne, %131, %132 : vector<1x128xi32>
    %134 = arith.extui %133 : vector<1x128xi1> to vector<1x128xi32>
    %135 = arith.sitofp %134 : vector<1x128xi32> to vector<1x128xf32>
    %c15_i32 = arith.constant 15 : i32
    %136 = vector.broadcast %c15_i32 : i32 to vector<1x128xi32>
    %137 = arith.cmpi ne, %131, %136 : vector<1x128xi32>
    %138 = arith.extui %137 : vector<1x128xi1> to vector<1x128xi32>
    %139 = arith.sitofp %138 : vector<1x128xi32> to vector<1x128xf32>
    %cst_56 = arith.constant 0.000000e+00 : f32
    %140 = vector.broadcast %cst_56 : f32 to vector<4x128xf32>
    %c0_57 = arith.constant 0 : index
    %c0_58 = arith.constant 0 : index
    %141 = vector.load %arg12[%c0_57, %c0_58] : memref<4x162xf32, #tpu.memory_space<vmem>>, vector<4x128xf32>
    %142 = vector.broadcast %135 : vector<1x128xf32> to vector<4x128xf32>
    %143 = arith.mulf %141, %142 : vector<4x128xf32>
    %c0_59 = arith.constant 0 : index
    %c0_60 = arith.constant 0 : index
    %144 = vector.load %arg8[%c0_59, %c0_60] : memref<4x9xf32, #tpu.memory_space<vmem>>, vector<4x1xf32>
    %145 = vector.broadcast %144 : vector<4x1xf32> to vector<4x128xf32>
    %146 = arith.mulf %145, %143 : vector<4x128xf32>
    %147 = arith.addf %140, %146 : vector<4x128xf32>
    %c0_61 = arith.constant 0 : index
    %c1_62 = arith.constant 1 : index
    %148 = vector.load %arg12[%c0_61, %c1_62] : memref<4x162xf32, #tpu.memory_space<vmem>>, vector<4x128xf32>
    %c0_63 = arith.constant 0 : index
    %c1_64 = arith.constant 1 : index
    %149 = vector.load %arg8[%c0_63, %c1_64] : memref<4x9xf32, #tpu.memory_space<vmem>>, vector<4x1xf32>
    %150 = vector.broadcast %149 : vector<4x1xf32> to vector<4x128xf32>
    %151 = arith.mulf %150, %148 : vector<4x128xf32>
    %152 = arith.addf %147, %151 : vector<4x128xf32>
    %c0_65 = arith.constant 0 : index
    %c2_66 = arith.constant 2 : index
    %153 = vector.load %arg12[%c0_65, %c2_66] : memref<4x162xf32, #tpu.memory_space<vmem>>, vector<4x128xf32>
    %154 = vector.broadcast %139 : vector<1x128xf32> to vector<4x128xf32>
    %155 = arith.mulf %153, %154 : vector<4x128xf32>
    %c0_67 = arith.constant 0 : index
    %c2_68 = arith.constant 2 : index
    %156 = vector.load %arg8[%c0_67, %c2_68] : memref<4x9xf32, #tpu.memory_space<vmem>>, vector<4x1xf32>
    %157 = vector.broadcast %156 : vector<4x1xf32> to vector<4x128xf32>
    %158 = arith.mulf %157, %155 : vector<4x128xf32>
    %159 = arith.addf %152, %158 : vector<4x128xf32>
    %c0_69 = arith.constant 0 : index
    %c16 = arith.constant 16 : index
    %160 = vector.load %arg12[%c0_69, %c16] : memref<4x162xf32, #tpu.memory_space<vmem>>, vector<4x128xf32>
    %161 = vector.broadcast %135 : vector<1x128xf32> to vector<4x128xf32>
    %162 = arith.mulf %160, %161 : vector<4x128xf32>
    %c0_70 = arith.constant 0 : index
    %c3_71 = arith.constant 3 : index
    %163 = vector.load %arg8[%c0_70, %c3_71] : memref<4x9xf32, #tpu.memory_space<vmem>>, vector<4x1xf32>
    %164 = vector.broadcast %163 : vector<4x1xf32> to vector<4x128xf32>
    %165 = arith.mulf %164, %162 : vector<4x128xf32>
    %166 = arith.addf %159, %165 : vector<4x128xf32>
    %c0_72 = arith.constant 0 : index
    %c17_73 = arith.constant 17 : index
    %167 = vector.load %arg12[%c0_72, %c17_73] : memref<4x162xf32, #tpu.memory_space<vmem>>, vector<4x128xf32>
    %c0_74 = arith.constant 0 : index
    %c4 = arith.constant 4 : index
    %168 = vector.load %arg8[%c0_74, %c4] : memref<4x9xf32, #tpu.memory_space<vmem>>, vector<4x1xf32>
    %169 = vector.broadcast %168 : vector<4x1xf32> to vector<4x128xf32>
    %170 = arith.mulf %169, %167 : vector<4x128xf32>
    %171 = arith.addf %166, %170 : vector<4x128xf32>
    %c0_75 = arith.constant 0 : index
    %c18 = arith.constant 18 : index
    %172 = vector.load %arg12[%c0_75, %c18] : memref<4x162xf32, #tpu.memory_space<vmem>>, vector<4x128xf32>
    %173 = vector.broadcast %139 : vector<1x128xf32> to vector<4x128xf32>
    %174 = arith.mulf %172, %173 : vector<4x128xf32>
    %c0_76 = arith.constant 0 : index
    %c5 = arith.constant 5 : index
    %175 = vector.load %arg8[%c0_76, %c5] : memref<4x9xf32, #tpu.memory_space<vmem>>, vector<4x1xf32>
    %176 = vector.broadcast %175 : vector<4x1xf32> to vector<4x128xf32>
    %177 = arith.mulf %176, %174 : vector<4x128xf32>
    %178 = arith.addf %171, %177 : vector<4x128xf32>
    %c0_77 = arith.constant 0 : index
    %c32 = arith.constant 32 : index
    %179 = vector.load %arg12[%c0_77, %c32] : memref<4x162xf32, #tpu.memory_space<vmem>>, vector<4x128xf32>
    %180 = vector.broadcast %135 : vector<1x128xf32> to vector<4x128xf32>
    %181 = arith.mulf %179, %180 : vector<4x128xf32>
    %c0_78 = arith.constant 0 : index
    %c6 = arith.constant 6 : index
    %182 = vector.load %arg8[%c0_78, %c6] : memref<4x9xf32, #tpu.memory_space<vmem>>, vector<4x1xf32>
    %183 = vector.broadcast %182 : vector<4x1xf32> to vector<4x128xf32>
    %184 = arith.mulf %183, %181 : vector<4x128xf32>
    %185 = arith.addf %178, %184 : vector<4x128xf32>
    %c0_79 = arith.constant 0 : index
    %c33 = arith.constant 33 : index
    %186 = vector.load %arg12[%c0_79, %c33] : memref<4x162xf32, #tpu.memory_space<vmem>>, vector<4x128xf32>
    %c0_80 = arith.constant 0 : index
    %c7 = arith.constant 7 : index
    %187 = vector.load %arg8[%c0_80, %c7] : memref<4x9xf32, #tpu.memory_space<vmem>>, vector<4x1xf32>
    %188 = vector.broadcast %187 : vector<4x1xf32> to vector<4x128xf32>
    %189 = arith.mulf %188, %186 : vector<4x128xf32>
    %190 = arith.addf %185, %189 : vector<4x128xf32>
    %c0_81 = arith.constant 0 : index
    %c34 = arith.constant 34 : index
    %191 = vector.load %arg12[%c0_81, %c34] : memref<4x162xf32, #tpu.memory_space<vmem>>, vector<4x128xf32>
    %192 = vector.broadcast %139 : vector<1x128xf32> to vector<4x128xf32>
    %193 = arith.mulf %191, %192 : vector<4x128xf32>
    %c0_82 = arith.constant 0 : index
    %c8 = arith.constant 8 : index
    %194 = vector.load %arg8[%c0_82, %c8] : memref<4x9xf32, #tpu.memory_space<vmem>>, vector<4x1xf32>
    %195 = vector.broadcast %194 : vector<4x1xf32> to vector<4x128xf32>
    %196 = arith.mulf %195, %193 : vector<4x128xf32>
    %197 = arith.addf %190, %196 : vector<4x128xf32>
    %c0_83 = arith.constant 0 : index
    %c0_84 = arith.constant 0 : index
    %198 = vector.load %arg9[%c0_83, %c0_84] : memref<4x1xf32, #tpu.memory_space<vmem>>, vector<4x1xf32>
    %199 = vector.broadcast %198 : vector<4x1xf32> to vector<4x128xf32>
    %200 = arith.mulf %197, %199 : vector<4x128xf32>
    %c0_85 = arith.constant 0 : index
    %c0_86 = arith.constant 0 : index
    %201 = vector.load %arg10[%c0_85, %c0_86] : memref<4x1xf32, #tpu.memory_space<vmem>>, vector<4x1xf32>
    %202 = vector.broadcast %201 : vector<4x1xf32> to vector<4x128xf32>
    %203 = arith.addf %200, %202 : vector<4x128xf32>
    %cst_87 = arith.constant 0.000000e+00 : f32
    %204 = vector.broadcast %cst_87 : f32 to vector<4x128xf32>
    %205 = arith.maximumf %203, %204 : vector<4x128xf32>
    %206 = tpu.concatenate %32, %205 in 0 : vector<4x128xf32>, vector<4x128xf32> -> vector<8x128xf32>
    %c0_88 = arith.constant 0 : index
    %c0_89 = arith.constant 0 : index
    %c0_90 = arith.constant 0 : index
    %207 = vector.load %arg11[%c0_88, %c0_89, %c0_90] : memref<1x8x128xf32, #tpu.memory_space<vmem>>, vector<1x8x128xf32>
    %208 = vector.shape_cast %207 : vector<1x8x128xf32> to vector<8x128xf32>
    %209 = vector.shape_cast %206 : vector<8x128xf32> to vector<1x8x128xf32>
    tpu.vector_store %arg11[%c0_88, %c0_89, %c0_90], %209 {strides = array<i32>} : memref<1x8x128xf32, #tpu.memory_space<vmem>>, vector<1x8x128xf32>,
    return
  }
  func.func @transform_0(%arg0: i32, %arg1: i32) -> (i32, i32, i32) {
    %c0_i32 = arith.constant 0 : i32
    %c0_i32_0 = arith.constant 0 : i32
    return %arg0, %c0_i32, %arg1 : i32, i32, i32
  }
  func.func @transform_1(%arg0: i32, %arg1: i32) -> (i32, i32, i32) {
    %c1_i32 = arith.constant 1 : i32
    %0 = arith.subi %arg1, %c1_i32 : i32
    %c0_i32 = arith.constant 0 : i32
    %1 = arith.maxsi %0, %c0_i32 : i32
    %c0_i32_0 = arith.constant 0 : i32
    %c0_i32_1 = arith.constant 0 : i32
    return %arg0, %c0_i32_0, %1 : i32, i32, i32
  }
  func.func @transform_2(%arg0: i32, %arg1: i32) -> (i32, i32, i32) {
    %c1_i32 = arith.constant 1 : i32
    %0 = arith.addi %arg1, %c1_i32 : i32
    %c1_i32_0 = arith.constant 1 : i32
    %1 = arith.minsi %0, %c1_i32_0 : i32
    %c0_i32 = arith.constant 0 : i32
    %c0_i32_1 = arith.constant 0 : i32
    return %arg0, %c0_i32, %1 : i32, i32, i32
  }
  func.func @transform_3(%arg0: i32, %arg1: i32) -> (i32, i32) {
    %c0_i32 = arith.constant 0 : i32
    %c0_i32_0 = arith.constant 0 : i32
    %c0_i32_1 = arith.constant 0 : i32
    return %c0_i32, %c0_i32_0 : i32, i32
  }
  func.func @transform_4(%arg0: i32, %arg1: i32) -> (i32, i32) {
    %c0_i32 = arith.constant 0 : i32
    %c0_i32_0 = arith.constant 0 : i32
    %c0_i32_1 = arith.constant 0 : i32
    return %c0_i32, %c0_i32_0 : i32, i32
  }
  func.func @transform_5(%arg0: i32, %arg1: i32) -> (i32, i32) {
    %c0_i32 = arith.constant 0 : i32
    %c0_i32_0 = arith.constant 0 : i32
    %c0_i32_1 = arith.constant 0 : i32
    return %c0_i32, %c0_i32_0 : i32, i32
  }
  func.func @transform_6(%arg0: i32, %arg1: i32) -> (i32, i32) {
    %c0_i32 = arith.constant 0 : i32
    %c0_i32_0 = arith.constant 0 : i32
    %c0_i32_1 = arith.constant 0 : i32
    return %c0_i32, %c0_i32_0 : i32, i32
  }
  func.func @transform_7(%arg0: i32, %arg1: i32) -> (i32, i32) {
    %c0_i32 = arith.constant 0 : i32
    %c0_i32_0 = arith.constant 0 : i32
    %c0_i32_1 = arith.constant 0 : i32
    return %c0_i32, %c0_i32_0 : i32, i32
  }
  func.func @transform_8(%arg0: i32, %arg1: i32) -> (i32, i32) {
    %c0_i32 = arith.constant 0 : i32
    %c0_i32_0 = arith.constant 0 : i32
    %c0_i32_1 = arith.constant 0 : i32
    return %c0_i32, %c0_i32_0 : i32, i32
  }
  func.func @transform_9(%arg0: i32, %arg1: i32) -> (i32, i32, i32) {
    %c0_i32 = arith.constant 0 : i32
    %c0_i32_0 = arith.constant 0 : i32
    return %arg0, %c0_i32, %arg1 : i32, i32, i32
  }
}

</mosaic_0001>

<llo_original>
// kernel: ghost_module.1
$region0: #{ghost_module.1}
  #allocation0 [shape = 'u32[]', space=smem, size = 0x4, offset = 0x4, fixed_abs, tag = 'smem constant byte address 0x4 - core index']
  #allocation1 [shape = 'u32[144,128]{1,0:T(1,128)}', space=vmem, size = 0x12000, scoped, tag = 'internal scratch']
  #allocation2 [shape = 'f32[4,162]{1,0:T(4,128)}', space=vmem, size = 0x1000, scoped, tag = 'scratch operand']
  %s0 = inlined_call_operand.vmem [shape: f32[2,4,256], index: 0, kind: input, shape index: {}, may-alias: {0,1,2}]
  %s1 = inlined_call_operand.vmem [shape: f32[2,4,256], index: 1, kind: input, shape index: {}, may-alias: {0,1,2}]
  %s2 = inlined_call_operand.vmem [shape: f32[2,4,256], index: 2, kind: input, shape index: {}, may-alias: {0,1,2}]
  %s3 = inlined_call_operand.vmem [shape: f32[4,4], index: 3, kind: input, shape index: {}]
  %s4 = inlined_call_operand.vmem [shape: f32[4,1], index: 4, kind: input, shape index: {}]
  %s5 = inlined_call_operand.vmem [shape: f32[4,1], index: 5, kind: input, shape index: {}]
  %s6 = inlined_call_operand.vmem [shape: f32[4,9], index: 6, kind: input, shape index: {}]
  %s7 = inlined_call_operand.vmem [shape: f32[4,1], index: 7, kind: input, shape index: {}]
  %s8 = inlined_call_operand.vmem [shape: f32[4,1], index: 8, kind: input, shape index: {}]
  %s9 = inlined_call_operand.vmem [shape: f32[2,8,256], index: 9, kind: output, shape index: {}]
  %s10 = sld [smem:[#allocation0]]
  $region69: #{ghost_module.1} parent=0
    _
  %s12 = ssub.s32 1, %s10
  %s13 = scalar_select 0, %s12, %s10
  loop: start=0, step=1, limit=6
  $region2: #{ghost_module.1} parent=0 // loop_pre_header
    _
  $region3: #{ghost_module.1} parent=0 // loop_header
    %s15 = sphi 0, %s19
    %p16 = scmp.ge.s32.totalorder %s15, 6
    %s22 = sphi 0, %s34
    %s23 = sphi 0, %s30
    %s24 = sphi 0, %s22
    %s25 = sphi 0, %s23
    %s26 = sphi 0, %s24
    %s27 = sphi 0, %s25
    %s39 = sphi 0, %s41
    %s42 = sphi 0, %s39
    %s43 = sphi 0, %s42
    %s59 = sphi 0, %s43
    %s73 = sphi 0, %s75
    %s76 = sphi 0, %s73
    %s77 = sphi 0, %s76
    %s93 = sphi 0, %s77
    %s107 = sphi 0, %s109
    %s110 = sphi 0, %s107
    %s111 = sphi 0, %s110
    %s127 = sphi 0, %s111
    %s131 = sphi 0, %s131
    %s133 = sphi 0, %s131
    %s134 = sphi 0, %s133
    %s148 = sphi 0, %s134
    %s152 = sphi 0, %s152
    %s154 = sphi 0, %s152
    %s155 = sphi 0, %s154
    %s169 = sphi 0, %s155
    %s173 = sphi 0, %s173
    %s175 = sphi 0, %s173
    %s176 = sphi 0, %s175
    %s190 = sphi 0, %s176
    %s194 = sphi 0, %s194
    %s196 = sphi 0, %s194
    %s197 = sphi 0, %s196
    %s211 = sphi 0, %s197
    %s215 = sphi 0, %s215
    %s217 = sphi 0, %s215
    %s218 = sphi 0, %s217
    %s232 = sphi 0, %s218
    %s236 = sphi 0, %s236
    %s238 = sphi 0, %s236
    %s239 = sphi 0, %s238
    %s253 = sphi 0, %s239
    %s261 = sphi 0, %s263
    %s264 = sphi 0, %s261
    %s265 = sphi 0, %s264
    %s281 = sphi 0, %s265
  $region4: #{ghost_module.1} parent=0 // loop_header_branch
    %18 = sbr.rel (%p16) target = $region8
  $region5: #{ghost_module.1} parent=0 // loop_body
    %s20 = ssub.s32 %s15, 1
    %s21 = ssub.s32 %s15, 2
    %s28 = sadd.s32 1, %s23
    %p29 = scmp.ge.s32.totalorder %s28, 2
    %s30 = scalar_select %p29, 0, %s28
    %s31 = sadd.s32 1, %s22
    %s32 = scalar_select %p29, %s31, %s22
    %p33 = scmp.ge.s32.totalorder %s32, 2
    %s34 = scalar_select %p33, 0, %s32
    %s35 = ssub.s32 %s22, %s34
    %s36 = ssub.s32 %s23, %s30
    %s37 = sor.u32 %s35, %s36
    %p38 = scmp.eq.s32.totalorder %s37, 0
    %s40 = sadd.s32 %s39, 1
    %s41 = scalar_select %p38, %s39, %s40
    %p44 = pneg %p38
    %p45 = scmp.eq.s32.totalorder %s15, 3
    %p46 = por %p44, %p45
    %p47 = scmp.ne.s32.totalorder %s39, %s42
    %p48 = scmp.eq.s32.totalorder %s15, 0
    %p49 = por %p47, %p48
    %p50 = scmp.ne.s32.totalorder %s39, %s42
    %p51 = scmp.eq.s32.totalorder %s20, 3
    %p52 = por %p50, %p51
    %p53 = scmp.ne.s32.totalorder %s42, %s43
    %p54 = scmp.eq.s32.totalorder %s20, 0
    %p55 = por %p53, %p54
    %p56 = scmp.ne.s32.totalorder %s42, %s43
    %p57 = scmp.eq.s32.totalorder %s21, 3
    %p58 = por %p56, %p57
    %p60 = scmp.ne.s32.totalorder %s43, %s59
    %p61 = scmp.eq.s32.totalorder %s21, 0
    %p62 = por %p60, %p61
    %s63 = ssub.s32 %s23, 1
    %p64 = scmp.gt.s32.totalorder %s63, 0
    %s65 = scalar_select %p64, %s63, 0
    %s66 = ssub.s32 %s30, 1
    %p67 = scmp.gt.s32.totalorder %s66, 0
    %s68 = scalar_select %p67, %s66, 0
    %s69 = ssub.s32 %s22, %s34
    %s70 = ssub.s32 %s65, %s68
    %s71 = sor.u32 %s69, %s70
    %p72 = scmp.eq.s32.totalorder %s71, 0
    %s74 = sadd.s32 %s73, 1
    %s75 = scalar_select %p72, %s73, %s74
    %p78 = pneg %p72
    %p79 = scmp.eq.s32.totalorder %s15, 3
    %p80 = por %p78, %p79
    %p81 = scmp.ne.s32.totalorder %s73, %s76
    %p82 = scmp.eq.s32.totalorder %s15, 0
    %p83 = por %p81, %p82
    %p84 = scmp.ne.s32.totalorder %s73, %s76
    %p85 = scmp.eq.s32.totalorder %s20, 3
    %p86 = por %p84, %p85
    %p87 = scmp.ne.s32.totalorder %s76, %s77
    %p88 = scmp.eq.s32.totalorder %s20, 0
    %p89 = por %p87, %p88
    %p90 = scmp.ne.s32.totalorder %s76, %s77
    %p91 = scmp.eq.s32.totalorder %s21, 3
    %p92 = por %p90, %p91
    %p94 = scmp.ne.s32.totalorder %s77, %s93
    %p95 = scmp.eq.s32.totalorder %s21, 0
    %p96 = por %p94, %p95
    %s97 = sadd.s32 %s23, 1
    %p98 = scmp.lt.s32.totalorder %s97, 1
    %s99 = scalar_select %p98, %s97, 1
    %s100 = sadd.s32 %s30, 1
    %p101 = scmp.lt.s32.totalorder %s100, 1
    %s102 = scalar_select %p101, %s100, 1
    %s103 = ssub.s32 %s22, %s34
    %s104 = ssub.s32 %s99, %s102
    %s105 = sor.u32 %s103, %s104
    %p106 = scmp.eq.s32.totalorder %s105, 0
    %s108 = sadd.s32 %s107, 1
    %s109 = scalar_select %p106, %s107, %s108
    %p112 = pneg %p106
    %p113 = scmp.eq.s32.totalorder %s15, 3
    %p114 = por %p112, %p113
    %p115 = scmp.ne.s32.totalorder %s107, %s110
    %p116 = scmp.eq.s32.totalorder %s15, 0
    %p117 = por %p115, %p116
    %p118 = scmp.ne.s32.totalorder %s107, %s110
    %p119 = scmp.eq.s32.totalorder %s20, 3
    %p120 = por %p118, %p119
    %p121 = scmp.ne.s32.totalorder %s110, %s111
    %p122 = scmp.eq.s32.totalorder %s20, 0
    %p123 = por %p121, %p122
    %p124 = scmp.ne.s32.totalorder %s110, %s111
    %p125 = scmp.eq.s32.totalorder %s21, 3
    %p126 = por %p124, %p125
    %p128 = scmp.ne.s32.totalorder %s111, %s127
    %p129 = scmp.eq.s32.totalorder %s21, 0
    %p130 = por %p128, %p129
    %s132 = sadd.s32 %s131, 1
    %p135 = scmp.eq.s32.totalorder %s15, 3
    %p136 = scmp.ne.s32.totalorder %s131, %s133
    %p137 = scmp.eq.s32.totalorder %s15, 0
    %p138 = por %p136, %p137
    %p139 = scmp.ne.s32.totalorder %s131, %s133
    %p140 = scmp.eq.s32.totalorder %s20, 3
    %p141 = por %p139, %p140
    %p142 = scmp.ne.s32.totalorder %s133, %s134
    %p143 = scmp.eq.s32.totalorder %s20, 0
    %p144 = por %p142, %p143
    %p145 = scmp.ne.s32.totalorder %s133, %s134
    %p146 = scmp.eq.s32.totalorder %s21, 3
    %p147 = por %p145, %p146
    %p149 = scmp.ne.s32.totalorder %s134, %s148
    %p150 = scmp.eq.s32.totalorder %s21, 0
    %p151 = por %p149, %p150
    %s153 = sadd.s32 %s152, 1
    %p156 = scmp.eq.s32.totalorder %s15, 3
    %p157 = scmp.ne.s32.totalorder %s152, %s154
    %p158 = scmp.eq.s32.totalorder %s15, 0
    %p159 = por %p157, %p158
    %p160 = scmp.ne.s32.totalorder %s152, %s154
    %p161 = scmp.eq.s32.totalorder %s20, 3
    %p162 = por %p160, %p161
    %p163 = scmp.ne.s32.totalorder %s154, %s155
    %p164 = scmp.eq.s32.totalorder %s20, 0
    %p165 = por %p163, %p164
    %p166 = scmp.ne.s32.totalorder %s154, %s155
    %p167 = scmp.eq.s32.totalorder %s21, 3
    %p168 = por %p166, %p167
    %p170 = scmp.ne.s32.totalorder %s155, %s169
    %p171 = scmp.eq.s32.totalorder %s21, 0
    %p172 = por %p170, %p171
    %s174 = sadd.s32 %s173, 1
    %p177 = scmp.eq.s32.totalorder %s15, 3
    %p178 = scmp.ne.s32.totalorder %s173, %s175
    %p179 = scmp.eq.s32.totalorder %s15, 0
    %p180 = por %p178, %p179
    %p181 = scmp.ne.s32.totalorder %s173, %s175
    %p182 = scmp.eq.s32.totalorder %s20, 3
    %p183 = por %p181, %p182
    %p184 = scmp.ne.s32.totalorder %s175, %s176
    %p185 = scmp.eq.s32.totalorder %s20, 0
    %p186 = por %p184, %p185
    %p187 = scmp.ne.s32.totalorder %s175, %s176
    %p188 = scmp.eq.s32.totalorder %s21, 3
    %p189 = por %p187, %p188
    %p191 = scmp.ne.s32.totalorder %s176, %s190
    %p192 = scmp.eq.s32.totalorder %s21, 0
    %p193 = por %p191, %p192
    %s195 = sadd.s32 %s194, 1
    %p198 = scmp.eq.s32.totalorder %s15, 3
    %p199 = scmp.ne.s32.totalorder %s194, %s196
    %p200 = scmp.eq.s32.totalorder %s15, 0
    %p201 = por %p199, %p200
    %p202 = scmp.ne.s32.totalorder %s194, %s196
    %p203 = scmp.eq.s32.totalorder %s20, 3
    %p204 = por %p202, %p203
    %p205 = scmp.ne.s32.totalorder %s196, %s197
    %p206 = scmp.eq.s32.totalorder %s20, 0
    %p207 = por %p205, %p206
    %p208 = scmp.ne.s32.totalorder %s196, %s197
    %p209 = scmp.eq.s32.totalorder %s21, 3
    %p210 = por %p208, %p209
    %p212 = scmp.ne.s32.totalorder %s197, %s211
    %p213 = scmp.eq.s32.totalorder %s21, 0
    %p214 = por %p212, %p213
    %s216 = sadd.s32 %s215, 1
    %p219 = scmp.eq.s32.totalorder %s15, 3
    %p220 = scmp.ne.s32.totalorder %s215, %s217
    %p221 = scmp.eq.s32.totalorder %s15, 0
    %p222 = por %p220, %p221
    %p223 = scmp.ne.s32.totalorder %s215, %s217
    %p224 = scmp.eq.s32.totalorder %s20, 3
    %p225 = por %p223, %p224
    %p226 = scmp.ne.s32.totalorder %s217, %s218
    %p227 = scmp.eq.s32.totalorder %s20, 0
    %p228 = por %p226, %p227
    %p229 = scmp.ne.s32.totalorder %s217, %s218
    %p230 = scmp.eq.s32.totalorder %s21, 3
    %p231 = por %p229, %p230
    %p233 = scmp.ne.s32.totalorder %s218, %s232
    %p234 = scmp.eq.s32.totalorder %s21, 0
    %p235 = por %p233, %p234
    %s237 = sadd.s32 %s236, 1
    %p240 = scmp.eq.s32.totalorder %s15, 3
    %p241 = scmp.ne.s32.totalorder %s236, %s238
    %p242 = scmp.eq.s32.totalorder %s15, 0
    %p243 = por %p241, %p242
    %p244 = scmp.ne.s32.totalorder %s236, %s238
    %p245 = scmp.eq.s32.totalorder %s20, 3
    %p246 = por %p244, %p245
    %p247 = scmp.ne.s32.totalorder %s238, %s239
    %p248 = scmp.eq.s32.totalorder %s20, 0
    %p249 = por %p247, %p248
    %p250 = scmp.ne.s32.totalorder %s238, %s239
    %p251 = scmp.eq.s32.totalorder %s21, 3
    %p252 = por %p250, %p251
    %p254 = scmp.ne.s32.totalorder %s239, %s253
    %p255 = scmp.eq.s32.totalorder %s21, 0
    %p256 = por %p254, %p255
    %s257 = ssub.s32 %s22, %s34
    %s258 = ssub.s32 %s23, %s30
    %s259 = sor.u32 %s257, %s258
    %p260 = scmp.eq.s32.totalorder %s259, 0
    %s262 = sadd.s32 %s261, 1
    %s263 = scalar_select %p260, %s261, %s262
    %p266 = pneg %p260
    %p267 = scmp.eq.s32.totalorder %s15, 3
    %p268 = por %p266, %p267
    %p269 = scmp.ne.s32.totalorder %s261, %s264
    %p270 = scmp.eq.s32.totalorder %s15, 0
    %p271 = por %p269, %p270
    %p272 = scmp.ne.s32.totalorder %s261, %s264
    %p273 = scmp.eq.s32.totalorder %s20, 3
    %p274 = por %p272, %p273
    %p275 = scmp.ne.s32.totalorder %s264, %s265
    %p276 = scmp.eq.s32.totalorder %s20, 0
    %p277 = por %p275, %p276
    %p278 = scmp.ne.s32.totalorder %s264, %s265
    %p279 = scmp.eq.s32.totalorder %s21, 3
    %p280 = por %p278, %p279
    %p282 = scmp.ne.s32.totalorder %s265, %s281
    %p283 = scmp.eq.s32.totalorder %s21, 0
    %p284 = por %p282, %p283
    %p285 = scmp.le.s32.totalorder 1, %s15
    %p286 = scmp.lt.s32.totalorder %s15, 5
    %p287 = pnand %p285, %p286
    %p288 = pneg %p287
    // Predicated region
    $region9: #{ghost_module.1} parent=5 // pred_check
      _
    $region10: #{ghost_module.1} parent=5 // pred_check_branch
      %290 = sbr.rel (%p287) target = $region12
    $region11: #{ghost_module.1} parent=5 // pred_region
      %s291 = ssub.s32 %s15, 1
      // Predicated region
      $region13: #{ghost_module.1} parent=11 // pred_check
        %p292 = pneg %p144
      $region14: #{ghost_module.1} parent=11 // pred_check_branch
        %294 = sbr.rel (%p292) target = $region16
      $region15: #{ghost_module.1} parent=11 // pred_region
        _
      $region16: #{ghost_module.1} parent=11 // pred_fallthru
        _
      // Predicated region
      $region17: #{ghost_module.1} parent=11 // pred_check
        %p295 = pneg %p165
      $region18: #{ghost_module.1} parent=11 // pred_check_branch
        %297 = sbr.rel (%p295) target = $region20
      $region19: #{ghost_module.1} parent=11 // pred_region
        _
      $region20: #{ghost_module.1} parent=11 // pred_fallthru
        _
      // Predicated region
      $region21: #{ghost_module.1} parent=11 // pred_check
        %p298 = pneg %p186
      $region22: #{ghost_module.1} parent=11 // pred_check_branch
        %300 = sbr.rel (%p298) target = $region24
      $region23: #{ghost_module.1} parent=11 // pred_region
        _
      $region24: #{ghost_module.1} parent=11 // pred_fallthru
        _
      // Predicated region
      $region25: #{ghost_module.1} parent=11 // pred_check
        %p301 = pneg %p207
      $region26: #{ghost_module.1} parent=11 // pred_check_branch
        %303 = sbr.rel (%p301) target = $region28
      $region27: #{ghost_module.1} parent=11 // pred_region
        _
      $region28: #{ghost_module.1} parent=11 // pred_fallthru
        _
      // Predicated region
      $region29: #{ghost_module.1} parent=11 // pred_check
        %p304 = pneg %p228
      $region30: #{ghost_module.1} parent=11 // pred_check_branch
        %306 = sbr.rel (%p304) target = $region32
      $region31: #{ghost_module.1} parent=11 // pred_region
        _
      $region32: #{ghost_module.1} parent=11 // pred_fallthru
        _
      // Predicated region
      $region33: #{ghost_module.1} parent=11 // pred_check
        %p307 = pneg %p249
      $region34: #{ghost_module.1} parent=11 // pred_check_branch
        %309 = sbr.rel (%p307) target = $region36
      $region35: #{ghost_module.1} parent=11 // pred_region
        _
      $region36: #{ghost_module.1} parent=11 // pred_fallthru
        _
    $region12: #{ghost_module.1} parent=5 // pred_fallthru
      _
    %p310 = scmp.lt.s32.totalorder %s15, 4
    // Predicated region
    $region37: #{ghost_module.1} parent=5 // pred_check
      %p311 = pneg %p310
    $region38: #{ghost_module.1} parent=5 // pred_check_branch
      %313 = sbr.rel (%p311) target = $region40
    $region39: #{ghost_module.1} parent=5 // pred_region
      // Predicated region
      $region41: #{ghost_module.1} parent=39 // pred_check
        %p314 = pneg %p49
      $region42: #{ghost_module.1} parent=39 // pred_check_branch
        %316 = sbr.rel (%p314) target = $region44
      $region43: #{ghost_module.1} parent=39 // pred_region
        %p317 = scmp.lt.s32.totalorder %s22, 1
        %s318 = scalar_select %p317, %s22, 1
        %p319 = scmp.lt.s32.totalorder %s23, 1
        %s320 = scalar_select %p319, %s23, 1
        %s321 = smul.addr %s318, 2
        %s322 = sadd.s32 %s320, %s321
        %s323 = smul.addr %s322, 4
        %s324 = scalar_lea.vmem %s0, %s323
      $region44: #{ghost_module.1} parent=39 // pred_fallthru
        _
      // Predicated region
      $region45: #{ghost_module.1} parent=39 // pred_check
        %p325 = pneg %p83
      $region46: #{ghost_module.1} parent=39 // pred_check_branch
        %327 = sbr.rel (%p325) target = $region48
      $region47: #{ghost_module.1} parent=39 // pred_region
        %s328 = ssub.s32 %s23, 1
        %p329 = scmp.gt.s32.totalorder %s328, 0
        %s330 = scalar_select %p329, %s328, 0
        %p331 = scmp.lt.s32.totalorder %s22, 1
        %s332 = scalar_select %p331, %s22, 1
        %p333 = scmp.lt.s32.totalorder %s330, 1
        %s334 = scalar_select %p333, %s330, 1
        %s335 = smul.addr %s332, 2
        %s336 = sadd.s32 %s334, %s335
        %s337 = smul.addr %s336, 4
        %s338 = scalar_lea.vmem %s1, %s337
        %s339 = ssub.s32 %s23, 1
        %p340 = scmp.gt.s32.totalorder %s339, 0
        %s341 = scalar_select %p340, %s339, 0
      $region48: #{ghost_module.1} parent=39 // pred_fallthru
        _
      // Predicated region
      $region49: #{ghost_module.1} parent=39 // pred_check
        %p342 = pneg %p117
      $region50: #{ghost_module.1} parent=39 // pred_check_branch
        %344 = sbr.rel (%p342) target = $region52
      $region51: #{ghost_module.1} parent=39 // pred_region
        %s345 = sadd.s32 %s23, 1
        %p346 = scmp.lt.s32.totalorder %s345, 1
        %s347 = scalar_select %p346, %s345, 1
        %p348 = scmp.lt.s32.totalorder %s22, 1
        %s349 = scalar_select %p348, %s22, 1
        %p350 = scmp.lt.s32.totalorder %s347, 1
        %s351 = scalar_select %p350, %s347, 1
        %s352 = smul.addr %s349, 2
        %s353 = sadd.s32 %s351, %s352
        %s354 = smul.addr %s353, 4
        %s355 = scalar_lea.vmem %s2, %s354
        %s356 = sadd.s32 %s23, 1
        %p357 = scmp.lt.s32.totalorder %s356, 1
        %s358 = scalar_select %p357, %s356, 1
      $region52: #{ghost_module.1} parent=39 // pred_fallthru
        _
    $region40: #{ghost_module.1} parent=5 // pred_fallthru
      _
    %p359 = scmp.le.s32.totalorder 1, %s15
    %p360 = scmp.lt.s32.totalorder %s15, 5
    %p361 = pnand %p359, %p360
    %p362 = pneg %p361
    // Predicated region
    $region53: #{ghost_module.1} parent=5 // pred_check
      _
    $region54: #{ghost_module.1} parent=5 // pred_check_branch
      %364 = sbr.rel (%p361) target = $region56
    $region55: #{ghost_module.1} parent=5 // pred_region
      %s365 = ssub.s32 %s15, 1
      %p366 = scmp.lt.s32.totalorder %s24, 1
      %s367 = scalar_select %p366, %s24, 1
      %p368 = scmp.lt.s32.totalorder %s25, 1
      %s369 = scalar_select %p368, %s25, 1
      %s370 = smul.addr %s367, 2
      %s371 = sadd.s32 %s369, %s370
      %s372 = smul.addr %s371, 4
      %s373 = scalar_lea.vmem %s0, %s372
      %p374 = pneg %p55
      %p375 = pneg %p52
      %s376 = ssub.s32 %s25, 1
      %p377 = scmp.gt.s32.totalorder %s376, 0
      %s378 = scalar_select %p377, %s376, 0
      %p379 = scmp.lt.s32.totalorder %s24, 1
      %s380 = scalar_select %p379, %s24, 1
      %p381 = scmp.lt.s32.totalorder %s378, 1
      %s382 = scalar_select %p381, %s378, 1
      %s383 = smul.addr %s380, 2
      %s384 = sadd.s32 %s382, %s383
      %s385 = smul.addr %s384, 4
      %s386 = scalar_lea.vmem %s1, %s385
      %p387 = pneg %p89
      %p388 = pneg %p86
      %s389 = sadd.s32 %s25, 1
      %p390 = scmp.lt.s32.totalorder %s389, 1
      %s391 = scalar_select %p390, %s389, 1
      %p392 = scmp.lt.s32.totalorder %s24, 1
      %s393 = scalar_select %p392, %s24, 1
      %p394 = scmp.lt.s32.totalorder %s391, 1
      %s395 = scalar_select %p394, %s391, 1
      %s396 = smul.addr %s393, 2
      %s397 = sadd.s32 %s395, %s396
      %s398 = smul.addr %s397, 4
      %s399 = scalar_lea.vmem %s2, %s398
      %p400 = pneg %p123
      %p401 = pneg %p120
      %p402 = pneg %p144
      %p403 = pneg %p141
      %p404 = pneg %p165
      %p405 = pneg %p162
      %p406 = pneg %p186
      %p407 = pneg %p183
      %p408 = pneg %p207
      %p409 = pneg %p204
      %p410 = pneg %p228
      %p411 = pneg %p225
      %p412 = pneg %p249
      %p413 = pneg %p246
      %p414 = pneg %p277
      %p415 = pneg %p274
      %p416 = scmp.lt.s32.totalorder %s24, 1
      %s417 = scalar_select %p416, %s24, 1
      %p418 = scmp.lt.s32.totalorder %s25, 1
      %s419 = scalar_select %p418, %s25, 1
      %s420 = smul.addr %s417, 2
      %s421 = sadd.s32 %s419, %s420
      %s422 = smul.addr %s421, 8
      %s423 = scalar_lea.vmem %s9, %s422
      %p424 = scmp.lt.s32.totalorder %s24, 1
      %s425 = scalar_select %p424, %s24, 1
      %p426 = scmp.lt.s32.totalorder %s25, 1
      %s427 = scalar_select %p426, %s25, 1
      %s428 = smul.addr %s425, 2
      %s429 = sadd.s32 %s427, %s428
      %s430 = smul.addr %s429, 4
      %s431 = scalar_lea.vmem %s0, %s430
      %s432 = ssub.s32 %s25, 1
      %p433 = scmp.gt.s32.totalorder %s432, 0
      %s434 = scalar_select %p433, %s432, 0
      %p435 = scmp.lt.s32.totalorder %s24, 1
      %s436 = scalar_select %p435, %s24, 1
      %p437 = scmp.lt.s32.totalorder %s434, 1
      %s438 = scalar_select %p437, %s434, 1
      %s439 = smul.addr %s436, 2
      %s440 = sadd.s32 %s438, %s439
      %s441 = smul.addr %s440, 4
      %s442 = scalar_lea.vmem %s1, %s441
      %s443 = ssub.s32 %s25, 1
      %p444 = scmp.gt.s32.totalorder %s443, 0
      %s445 = scalar_select %p444, %s443, 0
      %s446 = sadd.s32 %s25, 1
      %p447 = scmp.lt.s32.totalorder %s446, 1
      %s448 = scalar_select %p447, %s446, 1
      %p449 = scmp.lt.s32.totalorder %s24, 1
      %s450 = scalar_select %p449, %s24, 1
      %p451 = scmp.lt.s32.totalorder %s448, 1
      %s452 = scalar_select %p451, %s448, 1
      %s453 = smul.addr %s450, 2
      %s454 = sadd.s32 %s452, %s453
      %s455 = smul.addr %s454, 4
      %s456 = scalar_lea.vmem %s2, %s455
      %s457 = sadd.s32 %s25, 1
      %p458 = scmp.lt.s32.totalorder %s457, 1
      %s459 = scalar_select %p458, %s457, 1
      %p460 = scmp.lt.s32.totalorder %s24, 1
      %s461 = scalar_select %p460, %s24, 1
      %p462 = scmp.lt.s32.totalorder %s25, 1
      %s463 = scalar_select %p462, %s25, 1
      %s464 = smul.addr %s461, 2
      %s465 = sadd.s32 %s463, %s464
      %s466 = smul.addr %s465, 8
      %s467 = scalar_lea.vmem %s9, %s466
      %v468 = vld [vmem:[%s431] sm:$0xf]
      %v469 = vld [vmem:[%s3] sm:$0xf]
      %471 = vset.pattern.permute.xlu0 0
      %472 = vperm.xlu0 %471, %v469
      %v473 = vpop.permute.xlu0 %472
      %v475 = vlaneseq
      %v476 = vshrl.u32 %v475, 7
      %v477 = vsub.s32 0, %v476
      %v478 = vrot.slane %v468, %v477
      %v479 = vmul.f32 %v473, %v478
      %480 = vset.pattern.permute.xlu0 1
      %481 = vperm.xlu0 %480, %v469
      %v482 = vpop.permute.xlu0 %481
      %v484 = vlaneseq
      %v485 = vshrl.u32 %v484, 7
      %v486 = vsub.s32 1, %v485
      %v487 = vrot.slane %v468, %v486
      %v488 = vmul.f32 %v482, %v487
      %v489 = vadd.f32 %v479, %v488
      %490 = vset.pattern.permute.xlu0 2
      %491 = vperm.xlu0 %490, %v469
      %v492 = vpop.permute.xlu0 %491
      %v494 = vlaneseq
      %v495 = vshrl.u32 %v494, 7
      %v496 = vsub.s32 2, %v495
      %v497 = vrot.slane %v468, %v496
      %v498 = vmul.f32 %v492, %v497
      %v499 = vadd.f32 %v489, %v498
      %500 = vset.pattern.permute.xlu0 3
      %501 = vperm.xlu0 %500, %v469
      %v502 = vpop.permute.xlu0 %501
      %v504 = vlaneseq
      %v505 = vshrl.u32 %v504, 7
      %v506 = vsub.s32 3, %v505
      %v507 = vrot.slane %v468, %v506
      %v508 = vmul.f32 %v502, %v507
      %v509 = vadd.f32 %v499, %v508
      %v510 = vld [vmem:[%s4] sm:$0xf]
      %512 = vset.pattern.permute.xlu0 0
      %513 = vperm.xlu0 %512, %v510
      %v514 = vpop.permute.xlu0 %513
      %v516 = vmul.f32 %v509, %v514
      %v517 = vld [vmem:[%s5] sm:$0xf]
      %519 = vset.pattern.permute.xlu0 0
      %520 = vperm.xlu0 %519, %v517
      %v521 = vpop.permute.xlu0 %520
      %v523 = vadd.f32 %v516, %v521
      %v524 = vmax.f32 %v523, 0.0
      %v525 = vld [vmem:[%s442] sm:$0xf]
      %v526 = vlaneseq
      %v527 = vshrl.u32 %v526, 7
      %v528 = vsub.s32 0, %v527
      %v529 = vrot.slane %v525, %v528
      %v530 = vmul.f32 %v473, %v529
      %v531 = vlaneseq
      %v532 = vshrl.u32 %v531, 7
      %v533 = vsub.s32 1, %v532
      %v534 = vrot.slane %v525, %v533
      %v535 = vmul.f32 %v482, %v534
      %v536 = vadd.f32 %v530, %v535
      %v537 = vlaneseq
      %v538 = vshrl.u32 %v537, 7
      %v539 = vsub.s32 2, %v538
      %v540 = vrot.slane %v525, %v539
      %v541 = vmul.f32 %v492, %v540
      %v542 = vadd.f32 %v536, %v541
      %v543 = vlaneseq
      %v544 = vshrl.u32 %v543, 7
      %v545 = vsub.s32 3, %v544
      %v546 = vrot.slane %v525, %v545
      %v547 = vmul.f32 %v502, %v546
      %v548 = vadd.f32 %v542, %v547
      %v549 = vmul.f32 %v548, %v514
      %v550 = vadd.f32 %v549, %v521
      %v551 = vmax.f32 %v550, 0.0
      %v552 = vld [vmem:[%s456] sm:$0xf]
      %v553 = vlaneseq
      %v554 = vshrl.u32 %v553, 7
      %v555 = vsub.s32 0, %v554
      %v556 = vrot.slane %v552, %v555
      %v557 = vmul.f32 %v473, %v556
      %v558 = vlaneseq
      %v559 = vshrl.u32 %v558, 7
      %v560 = vsub.s32 1, %v559
      %v561 = vrot.slane %v552, %v560
      %v562 = vmul.f32 %v482, %v561
      %v563 = vadd.f32 %v557, %v562
      %v564 = vlaneseq
      %v565 = vshrl.u32 %v564, 7
      %v566 = vsub.s32 2, %v565
      %v567 = vrot.slane %v552, %v566
      %v568 = vmul.f32 %v492, %v567
      %v569 = vadd.f32 %v563, %v568
      %v570 = vlaneseq
      %v571 = vshrl.u32 %v570, 7
      %v572 = vsub.s32 3, %v571
      %v573 = vrot.slane %v552, %v572
      %v574 = vmul.f32 %v502, %v573
      %v575 = vadd.f32 %v569, %v574
      %v576 = vmul.f32 %v575, %v514
      %v577 = vadd.f32 %v576, %v521
      %v578 = vmax.f32 %v577, 0.0
      %p579 = scmp.gt.s32.totalorder %s25, 0
      %s580 = scalar_select %p579, 1, 0
      %s581 = scvt.s32.f32 %s580
      %v582 = vstv %s581
      %v583 = vmul.f32 %v551, %v582
      %p584 = scmp.lt.s32.totalorder %s25, 1
      %s585 = scalar_select %p584, 1, 0
      %s586 = scvt.s32.f32 %s585
      %v587 = vstv %s586
      %v588 = vmul.f32 %v578, %v587
      %vm589 = vcmask 3072
      %590 = vst.msk [vmem:[#allocation2] sm:$0xf] %vm589, 0.0
      %592 = vrot.lane.b32.xlu0 %v583, 17
      %v593 = vpop.permute.xlu0 %592
      %vm595 = vcmask 134152
      %596 = vst.msk [vmem:[#allocation2] sm:$0xf] %vm595, %v593
      %598 = vrot.lane.b32.xlu0 %v524, 17
      %v599 = vpop.permute.xlu0 %598
      %v600 = vrot.slane %v599, 4
      %vm601 = vcmask 138240
      %v602 = vsel %vm601, %v600, %v599
      %vm604 = vcmask 1043592
      %vm605 = vcmask 138244
      %vm606 = vmor %vm605, %vm604
      %607 = vst.msk [vmem:[#allocation2] sm:$0xff] %vm606, %v602
      %609 = vrot.lane.b32.xlu0 %v588, 17
      %v610 = vpop.permute.xlu0 %609
      %vm612 = vcmask 265352
      %613 = vst.msk [vmem:[#allocation2 + $0x4] sm:$0xf] %vm612, %v610
      %vm614 = vcmask 273672
      %615 = vst.msk [vmem:[#allocation2 + $0x4] sm:$0xf] %vm614, 0.0
      %v616 = vlaneseq
      %v617 = vand.u32 %v616, 127
      %vm618 = vcmp.lt.s32.totalorder %v617, 0
      %v619 = vsub.s32 0, %v617
      %v620 = vsel %vm618, %v619, %v617
      %v621 = vshrl.u32 %v620, 4
      %v622 = vand.u32 %v620, 15
      %v623 = vsub.s32 0, %v622
      %v624 = vsel %vm618, %v623, %v622
      %vm625 = vcmp.ne.s32.totalorder %v624, 0
      %vm626 = vcmp.lt.s32.totalorder %v624, 0
      %vm627 = vmand %vm626, %vm625
      %v628 = vadd.s32 %v624, 16
      %v629 = vsel %vm627, %v628, %v624
      %vm630 = vcmp.ne.s32.totalorder %v629, 0
      %v631 = vsel %vm630, 1, 0
      %v632 = vcvt.s32.f32 %v631
      %vm633 = vcmp.ne.s32.totalorder %v629, 15
      %v634 = vsel %vm633, 1, 0
      %v635 = vcvt.s32.f32 %v634
      %v636 = vld [vmem:[#allocation2] sm:$0xf]
      %v637 = vmul.f32 %v636, %v632
      %v638 = vld [vmem:[%s6] sm:$0xf]
      %640 = vset.pattern.permute.xlu0 0
      %641 = vperm.xlu0 %640, %v638
      %v642 = vpop.permute.xlu0 %641
      %v644 = vmul.f32 %v642, %v637
      %v645 = vadd.f32 %v644, 0.0
      %v646 = vld [vmem:[#allocation2] sm:$0xff]
      %647 = vset.pattern.permute.xlu0 1
      %648 = vperm.xlu0 %647, %v638
      %v649 = vpop.permute.xlu0 %648
      %v652 = vcombine.high %v646, %v646
      %653 = vrot.lane.b32.xlu0 %v646, 127
      %v654 = vpop.permute.xlu0 %653
      %655 = vrot.lane.b32.xlu0 %v652, 127
      %v656 = vpop.permute.xlu0 %655
      %vm657 = vcmask 1039360
      %v658 = vsel %vm657, %v654, %v656
      %v660 = vmul.f32 %v649, %v658
      %v661 = vadd.f32 %v645, %v660
      %v662 = vld [vmem:[#allocation2] sm:$0xff]
      %664 = vrot.lane.b32.xlu0 %v635, 2
      %v665 = vpop.permute.xlu0 %664
      %v666 = vrot.slane %v665, 4
      %vm667 = vcmask 15360
      %v668 = vsel %vm667, %v666, %v665
      %v670 = vmul.f32 %v662, %v668
      %v671 = vld [vmem:[%s6] sm:$0xf]
      %673 = vset.pattern.permute.xlu0 2
      %674 = vperm.xlu0 %673, %v671
      %v675 = vpop.permute.xlu0 %674
      %v678 = vcombine.high %v670, %v670
      %679 = vrot.lane.b32.xlu0 %v670, 126
      %v680 = vpop.permute.xlu0 %679
      %681 = vrot.lane.b32.xlu0 %v678, 126
      %v682 = vpop.permute.xlu0 %681
      %vm683 = vcmask 1031168
      %v684 = vsel %vm683, %v680, %v682
      %v686 = vmul.f32 %v675, %v684
      %v687 = vadd.f32 %v661, %v686
      %v688 = vld [vmem:[#allocation2] sm:$0xff]
      %690 = vrot.lane.b32.xlu0 %v632, 16
      %v691 = vpop.permute.xlu0 %690
      %v692 = vrot.slane %v691, 4
      %vm693 = vcmask 130048
      %v694 = vsel %vm693, %v692, %v691
      %v696 = vmul.f32 %v688, %v694
      %v697 = vld [vmem:[%s6] sm:$0xf]
      %699 = vset.pattern.permute.xlu0 3
      %700 = vperm.xlu0 %699, %v697
      %v701 = vpop.permute.xlu0 %700
      %v704 = vcombine.high %v696, %v696
      %705 = vrot.lane.b32.xlu0 %v696, 112
      %v706 = vpop.permute.xlu0 %705
      %707 = vrot.lane.b32.xlu0 %v704, 112
      %v708 = vpop.permute.xlu0 %707
      %vm709 = vcmask 916480
      %v710 = vsel %vm709, %v706, %v708
      %v712 = vmul.f32 %v701, %v710
      %v713 = vadd.f32 %v687, %v712
      %v714 = vld [vmem:[#allocation2] sm:$0xff]
      %v715 = vld [vmem:[%s6] sm:$0xf]
      %717 = vset.pattern.permute.xlu0 4
      %718 = vperm.xlu0 %717, %v715
      %v719 = vpop.permute.xlu0 %718
      %v722 = vcombine.high %v714, %v714
      %723 = vrot.lane.b32.xlu0 %v714, 111
      %v724 = vpop.permute.xlu0 %723
      %725 = vrot.lane.b32.xlu0 %v722, 111
      %v726 = vpop.permute.xlu0 %725
      %vm727 = vcmask 908288
      %v728 = vsel %vm727, %v724, %v726
      %v730 = vmul.f32 %v719, %v728
      %v731 = vadd.f32 %v713, %v730
      %v732 = vld [vmem:[#allocation2] sm:$0xff]
      %733 = vrot.lane.b32.xlu0 %v635, 18
      %v734 = vpop.permute.xlu0 %733
      %v735 = vrot.slane %v734, 4
      %vm736 = vcmask 146432
      %v737 = vsel %vm736, %v735, %v734
      %v739 = vmul.f32 %v732, %v737
      %v740 = vld [vmem:[%s6] sm:$0xf]
      %742 = vset.pattern.permute.xlu0 5
      %743 = vperm.xlu0 %742, %v740
      %v744 = vpop.permute.xlu0 %743
      %v747 = vcombine.high %v739, %v739
      %748 = vrot.lane.b32.xlu0 %v739, 110
      %v749 = vpop.permute.xlu0 %748
      %750 = vrot.lane.b32.xlu0 %v747, 110
      %v751 = vpop.permute.xlu0 %750
      %vm752 = vcmask 900096
      %v753 = vsel %vm752, %v749, %v751
      %v755 = vmul.f32 %v744, %v753
      %v756 = vadd.f32 %v731, %v755
      %v757 = vld [vmem:[#allocation2] sm:$0xff]
      %758 = vrot.lane.b32.xlu0 %v632, 32
      %v759 = vpop.permute.xlu0 %758
      %v760 = vrot.slane %v759, 4
      %vm761 = vcmask 261120
      %v762 = vsel %vm761, %v760, %v759
      %v764 = vmul.f32 %v757, %v762
      %v765 = vld [vmem:[%s6] sm:$0xf]
      %767 = vset.pattern.permute.xlu0 6
      %768 = vperm.xlu0 %767, %v765
      %v769 = vpop.permute.xlu0 %768
      %v772 = vcombine.high %v764, %v764
      %773 = vrot.lane.b32.xlu0 %v764, 96
      %v774 = vpop.permute.xlu0 %773
      %775 = vrot.lane.b32.xlu0 %v772, 96
      %v776 = vpop.permute.xlu0 %775
      %vm777 = vcmask 785408
      %v778 = vsel %vm777, %v774, %v776
      %v780 = vmul.f32 %v769, %v778
      %v781 = vadd.f32 %v756, %v780
      %v782 = vld [vmem:[#allocation2] sm:$0xff]
      %v783 = vld [vmem:[%s6] sm:$0xf]
      %785 = vset.pattern.permute.xlu0 7
      %786 = vperm.xlu0 %785, %v783
      %v787 = vpop.permute.xlu0 %786
      %v790 = vcombine.high %v782, %v782
      %791 = vrot.lane.b32.xlu0 %v782, 95
      %v792 = vpop.permute.xlu0 %791
      %793 = vrot.lane.b32.xlu0 %v790, 95
      %v794 = vpop.permute.xlu0 %793
      %vm795 = vcmask 777216
      %v796 = vsel %vm795, %v792, %v794
      %v798 = vmul.f32 %v787, %v796
      %v799 = vadd.f32 %v781, %v798
      %v800 = vld [vmem:[#allocation2] sm:$0xff]
      %801 = vrot.lane.b32.xlu0 %v635, 34
      %v802 = vpop.permute.xlu0 %801
      %v803 = vrot.slane %v802, 4
      %vm804 = vcmask 277504
      %v805 = vsel %vm804, %v803, %v802
      %v807 = vmul.f32 %v800, %v805
      %v808 = vld [vmem:[%s6] sm:$0xf]
      %810 = vset.pattern.permute.xlu0 8
      %811 = vperm.xlu0 %810, %v808
      %v812 = vpop.permute.xlu0 %811
      %v815 = vcombine.high %v807, %v807
      %816 = vrot.lane.b32.xlu0 %v807, 94
      %v817 = vpop.permute.xlu0 %816
      %818 = vrot.lane.b32.xlu0 %v815, 94
      %v819 = vpop.permute.xlu0 %818
      %vm820 = vcmask 769024
      %v821 = vsel %vm820, %v817, %v819
      %v823 = vmul.f32 %v812, %v821
      %v824 = vadd.f32 %v799, %v823
      %v825 = vld [vmem:[%s7] sm:$0xf]
      %827 = vset.pattern.permute.xlu0 0
      %828 = vperm.xlu0 %827, %v825
      %v829 = vpop.permute.xlu0 %828
      %v831 = vmul.f32 %v824, %v829
      %v832 = vld [vmem:[%s8] sm:$0xf]
      %834 = vset.pattern.permute.xlu0 0
      %835 = vperm.xlu0 %834, %v832
      %v836 = vpop.permute.xlu0 %835
      %v838 = vadd.f32 %v831, %v836
      %v839 = vmax.f32 %v838, 0.0
      %v841 = vrot.slane %v839, 4
      %vm843 = vcmask 1043456
      %v844 = vsel %vm843, %v524, %v841
      %845 = vst [vmem:[%s467] sm:$0xff] %v844
      %p846 = scmp.lt.s32.totalorder %s24, 1
      %s847 = scalar_select %p846, %s24, 1
      %p848 = scmp.lt.s32.totalorder %s25, 1
      %s849 = scalar_select %p848, %s25, 1
      %s850 = smul.addr %s847, 2
      %s851 = sadd.s32 %s849, %s850
      %s852 = smul.addr %s851, 8
      %s853 = scalar_lea.vmem %s9, %s852
      // Predicated region
      $region57: #{ghost_module.1} parent=55 // pred_check
        %p854 = pneg %p274
      $region58: #{ghost_module.1} parent=55 // pred_check_branch
        %856 = sbr.rel (%p854) target = $region60
      $region59: #{ghost_module.1} parent=55 // pred_region
        _
      $region60: #{ghost_module.1} parent=55 // pred_fallthru
        _
    $region56: #{ghost_module.1} parent=5 // pred_fallthru
      _
    %p857 = scmp.le.s32.totalorder 2, %s15
    // Predicated region
    $region61: #{ghost_module.1} parent=5 // pred_check
      %p858 = pneg %p857
    $region62: #{ghost_module.1} parent=5 // pred_check_branch
      %860 = sbr.rel (%p858) target = $region64
    $region63: #{ghost_module.1} parent=5 // pred_region
      %s861 = ssub.s32 %s15, 2
      // Predicated region
      $region65: #{ghost_module.1} parent=63 // pred_check
        %p862 = pneg %p280
      $region66: #{ghost_module.1} parent=63 // pred_check_branch
        %864 = sbr.rel (%p862) target = $region68
      $region67: #{ghost_module.1} parent=63 // pred_region
        %p865 = scmp.lt.s32.totalorder %s26, 1
        %s866 = scalar_select %p865, %s26, 1
        %p867 = scmp.lt.s32.totalorder %s27, 1
        %s868 = scalar_select %p867, %s27, 1
        %s869 = smul.addr %s866, 2
        %s870 = sadd.s32 %s868, %s869
        %s871 = smul.addr %s870, 8
        %s872 = scalar_lea.vmem %s9, %s871
      $region68: #{ghost_module.1} parent=63 // pred_fallthru
        _
    $region64: #{ghost_module.1} parent=5 // pred_fallthru
      _
  $region6: #{ghost_module.1} parent=0 // loop_footer
    %s19 = sadd.s32 1, %s15
  $region7: #{ghost_module.1} parent=0 // loop_footer_branch
    %14 = sbr.rel target = $region3
  $region8: #{ghost_module.1} parent=0 // loop_exit
    _

</llo_original>
